<compile_context>
chip_gen: v5e
topology: v5e:2x2
jax: 0.10.0
libtpu: 0.0.40
codegen_flags: <defaults>
</compile_context>

<pallas_src>
import functools

import numpy as np
import jax
import jax.numpy as jnp
from jax import lax
from jax.experimental import pallas as pl
from jax.experimental.pallas import tpu as pltpu


def _round_up(x, m):
    return ((x + m - 1) // m) * m


# ----------------------------------------------------------------------------
# Fused MLP Pallas kernel:  h = x ; per layer: h = h @ W + b ; ReLU on all but
# the last layer (ReLU on the last too iff relu_last=True, used for convs).
# One pallas_call serves every conv (as im2col matmul), the whole vector MLP,
# and the fused fc1+fc2 image head.  Weights/biases use constant index_maps so
# they are DMA'd once and stay VMEM-resident across row tiles.
# ----------------------------------------------------------------------------
def _fused_mlp_kernel(*refs, num_layers, relu_last):
    x_ref, out_ref = refs[0], refs[-1]
    h = x_ref[...]
    for l in range(num_layers):
        w = refs[1 + 2 * l][...]          # (K_l, N_l), f32 or bf16
        b = refs[2 + 2 * l][...]          # (1, N_l), f32
        h = jnp.dot(h.astype(w.dtype), w, preferred_element_type=jnp.float32) + b
        if l < num_layers - 1 or relu_last:
            h = jnp.maximum(h, 0.0)
    out_ref[...] = h.astype(out_ref.dtype)


def _pick_row_tile(m, block_m):
    """Row tile + padded row count.  grid==1 uses the exact M (full-dim blocks are
    legal, no padding); grid>1 uses multiples of 8 and an even grid count so v7x's
    two TensorCores split the parallel axis evenly."""
    if m <= block_m:
        return m, m
    n = -(-m // block_m)
    if n > 1 and n % 2:
        n -= 1                     # even grid count; tm grows by at most 1.5x
    tm = _round_up(-(-m // n), 8)
    return tm, tm * n


def fused_mlp(x, layers, *, relu_last, out_dtype=jnp.float32, block_m=256):
    """x: (M, K0). layers: [(Wt (K_l, N_l), b (1, N_l)), ...] prepared at init time
    (pre-transposed / pre-padded). Returns (M, N_last) in out_dtype."""
    M, K0 = x.shape
    assert layers[0][0].shape[0] == K0, (layers[0][0].shape, K0)
    x = x.astype(layers[0][0].dtype)

    tm, Mp = _pick_row_tile(M, block_m)
    if Mp != M:
        x = jnp.pad(x, ((0, Mp - M), (0, 0)))

    n_out = layers[-1][0].shape[1]
    in_specs = [pl.BlockSpec((tm, K0), lambda i: (i, 0))]
    args = [x]
    flops = 0
    w_bytes = 0
    for wt, b in layers:
        kl, nl = wt.shape
        in_specs.append(pl.BlockSpec((kl, nl), lambda i: (0, 0)))   # resident weight
        in_specs.append(pl.BlockSpec((1, nl), lambda i: (0, 0)))    # resident bias
        args.extend([wt, b])
        flops += 2 * Mp * kl * nl
        w_bytes += wt.size * wt.dtype.itemsize + b.size * b.dtype.itemsize

    bytes_accessed = (Mp * K0 * x.dtype.itemsize + w_bytes
                      + Mp * n_out * np.dtype(out_dtype).itemsize)
    cost = pl.CostEstimate(flops=int(flops), transcendentals=0,
                           bytes_accessed=int(bytes_accessed))

    out = pl.pallas_call(
        functools.partial(_fused_mlp_kernel,
                          num_layers=len(layers), relu_last=relu_last),
        out_shape=jax.ShapeDtypeStruct((Mp, n_out), out_dtype),
        grid=(Mp // tm,),
        in_specs=in_specs,
        out_specs=pl.BlockSpec((tm, n_out), lambda i: (i, 0)),
        compiler_params=pltpu.CompilerParams(
            dimension_semantics=("parallel",),
            vmem_limit_bytes=32 * 1024 * 1024),
        cost_estimate=cost,
    )(*args)
    # Padded rows carry bias+ReLU garbage: slice them off right here.
    return out if Mp == M else out[:M]


# ----------------------------------------------------------------------------
# Conv2d (VALID, stride s) = fused XLA patch-extraction + fused Pallas matmul.
# Activations stay NHWC; patch feature order is C-major (C, kh, kw), matching
# PyTorch weight.reshape(Cout, C*kh*kw) — so zero-padded input channels occupy
# a contiguous trailing block of (inert, zero) weight rows.
# ----------------------------------------------------------------------------
def pallas_conv2d_nhwc(x_nhwc, wt, b, kernel_hw, stride):
    # x_nhwc: (N, H, W, C); wt: (C*kh*kw, Cout_padded) pre-transposed; b: (1, Cout_padded)
    x_nhwc = x_nhwc.astype(wt.dtype)
    kh, kw = kernel_hw
    patches = lax.conv_general_dilated_patches(
        x_nhwc, (kh, kw), (stride, stride), "VALID",
        dimension_numbers=("NHWC", "HWIO", "NHWC"))
    nb, ho, wo, kk = patches.shape
    cols = patches.reshape(nb * ho * wo, kk)
    cout = wt.shape[1]
    y = fused_mlp(cols, [(wt, b)], relu_last=True, out_dtype=wt.dtype)
    return y.reshape(nb, ho, wo, cout)


# ----------------------------------------------------------------------------
# Parameter init (PyTorch layouts, deterministic).  The pure-JAX reference uses
# these directly; the Pallas path consumes the prepare_* packs below.
# ----------------------------------------------------------------------------
def _init_linear(key, dim_in, dim_out):
    kw, kb = jax.random.split(key)
    bound = 1.0 / (dim_in ** 0.5)
    w = jax.random.uniform(kw, (dim_out, dim_in), jnp.float32, -bound, bound)
    b = jax.random.uniform(kb, (dim_out,), jnp.float32, -bound, bound)
    return w, b


def _init_conv(key, c_in, c_out, k):
    kw, kb = jax.random.split(key)
    fan_in = c_in * k * k
    bound = 1.0 / (fan_in ** 0.5)
    w = jax.random.uniform(kw, (c_out, c_in, k, k), jnp.float32, -bound, bound)
    b = jax.random.uniform(kb, (c_out,), jnp.float32, -bound, bound)
    return w, b


def init_qnetwork_vector(key, dim_obs, dims_hidden_neurons, dim_action):
    n_neurons = (dim_obs,) + tuple(dims_hidden_neurons) + (dim_action,)
    params = []
    for d_in, d_out in zip(n_neurons[:-1], n_neurons[1:]):
        key, sub = jax.random.split(key)
        params.append(_init_linear(sub, d_in, d_out))
    return params


def init_qnetwork_image(key, dim_action):
    k1, k2, k3, k4, k5 = jax.random.split(key, 5)
    return {
        "conv1": _init_conv(k1, 3, 32, 8),
        "conv2": _init_conv(k2, 32, 64, 3),
        "conv3": _init_conv(k3, 64, 64, 2),
        "fc1": _init_linear(k4, 3072, 512),
        "fc2": _init_linear(k5, 512, dim_action),
    }


# ----------------------------------------------------------------------------
# One-time parameter preparation (all transposes / pads / permutes happen here,
# never at runtime).
# ----------------------------------------------------------------------------
def prepare_vector_params(params, compute_dtype=jnp.float32):
    dims = [params[0][0].shape[1]] + [w.shape[0] for (w, _) in params]
    # Layer-0 K stays at dim_obs (no runtime pad of x); hidden/output dims are
    # lane-padded to 128 with inert zeros (zero weights/bias, ReLU(0)=0).
    padded = [dims[0]] + [_round_up(d, 128) for d in dims[1:]]
    layers = []
    for l, (w, b) in enumerate(params):
        n, k = w.shape
        kp, np_ = padded[l], padded[l + 1]
        wt = jnp.zeros((kp, np_), compute_dtype).at[:k, :n].set(
            w.T.astype(compute_dtype))
        bp = jnp.zeros((1, np_), jnp.float32).at[0, :n].set(b)
        layers.append((wt, bp))
    return {"layers": layers, "dim_in": dims[0], "dim_out": dims[-1]}


def _conv_out(h, w, k, s):
    return (h - k) // s + 1, (w - k) // s + 1


_CONV_DEFS = (("conv1", 8, 4), ("conv2", 3, 2), ("conv3", 2, 1))


def prepare_image_params(params, input_hw, compute_dtype=jnp.bfloat16):
    convs = []
    h, w = input_hw
    c_in_pad = 3                                   # raw image channels, never padded
    for idx, (name, k, s) in enumerate(_CONV_DEFS):
        cw, cb = params[name]
        cout, cin, kh, kw = cw.shape
        last = (idx == len(_CONV_DEFS) - 1)
        # conv1/conv2 outputs are stored to HBM -> pad cout to 128 (lane-dense vst).
        # conv3 output only feeds fc1 (96 rows): padding it would double fc1's K
        # rows / weight DMA (the dominant cost), so keep it at its real 64.
        cout_pad = cout if last else _round_up(cout, 128)
        kk = c_in_pad * kh * kw
        wt = jnp.zeros((kk, cout_pad), compute_dtype)
        # Patch features are C-major: real input channels occupy the first
        # cin*kh*kw rows; zero-padded channels hit trailing zero rows (inert).
        wt = wt.at[: cin * kh * kw, :cout].set(
            cw.reshape(cout, cin * kh * kw).T.astype(compute_dtype))
        bp = jnp.zeros((1, cout_pad), jnp.float32).at[0, :cout].set(cb)
        convs.append({"wt": wt, "b": bp, "k": (kh, kw), "stride": s})
        h, w = _conv_out(h, w, k, s)
        c_in_pad = cout_pad

    c3 = params["conv3"][0].shape[0]
    fc1_w, fc1_b = params["fc1"]
    n_flat = c3 * h * w
    assert fc1_w.shape[1] == n_flat, (fc1_w.shape, n_flat)
    # nn.Flatten flattens NCHW (C,H,W); our activations flatten (H,W,C): fold the
    # permutation into fc1's columns once here (zero runtime cost).
    w1 = fc1_w.reshape(-1, c3, h, w).transpose(0, 2, 3, 1).reshape(-1, n_flat)
    w1t = w1.T.astype(compute_dtype)                        # (3072, 512)
    b1 = fc1_b.reshape(1, -1).astype(jnp.float32)
    fc2_w, fc2_b = params["fc2"]
    dim_action, d_hid = fc2_w.shape
    npad = _round_up(dim_action, 128)                       # lane-dense final store
    w2t = jnp.zeros((d_hid, npad), compute_dtype).at[:, :dim_action].set(
        fc2_w.T.astype(compute_dtype))
    b2 = jnp.zeros((1, npad), jnp.float32).at[0, :dim_action].set(fc2_b)
    return {"convs": convs, "head": [(w1t, b1), (w2t, b2)], "dim_out": dim_action}


# ----------------------------------------------------------------------------
# Forward passes.
# ----------------------------------------------------------------------------
def qnetwork_vector_forward(x, prep):
    y = fused_mlp(x, prep["layers"], relu_last=False)       # ONE kernel, all layers
    return y[:, :prep["dim_out"]]


def qnetwork_image_forward(x_nchw, prep):
    dt = prep["head"][0][0].dtype
    x = jnp.transpose(x_nchw, (0, 2, 3, 1)).astype(dt)      # NCHW boundary -> NHWC once
    for conv in prep["convs"]:
        x = pallas_conv2d_nhwc(x, conv["wt"], conv["b"], conv["k"], conv["stride"])
    x = x.reshape(x.shape[0], -1)                           # NHWC-flat (fc1 pre-permuted)
    y = fused_mlp(x, prep["head"], relu_last=False)         # fc1+ReLU+fc2 fused, f32 out
    return y[:, :prep["dim_out"]]


# ----------------------------------------------------------------------------
# Pure-JAX references (correctness only), on the original PyTorch-layout params.
# ----------------------------------------------------------------------------
def _ref_linear(x, w, b, relu):
    y = x @ w.T + b
    return jnp.maximum(y, 0.0) if relu else y


def _ref_conv(x, w, b, stride, relu):
    y = lax.conv_general_dilated(x, w, (stride, stride), "VALID",
                                 dimension_numbers=("NCHW", "OIHW", "NCHW"))
    y = y + b.reshape(1, -1, 1, 1)
    return jnp.maximum(y, 0.0) if relu else y


def ref_vector_forward(x, params):
    n = len(params)
    for i, (w, b) in enumerate(params):
        x = _ref_linear(x, w, b, relu=(i < n - 1))
    return x


def ref_image_forward(x, params):
    x = _ref_conv(x, *params["conv1"], 4, True)
    x = _ref_conv(x, *params["conv2"], 2, True)
    x = _ref_conv(x, *params["conv3"], 1, True)
    x = x.reshape(x.shape[0], -1)
    x = _ref_linear(x, *params["fc1"], True)
    x = _ref_linear(x, *params["fc2"], False)
    return x


if __name__ == "__main__":
    key = jax.random.PRNGKey(0)
    k_in_v, k_in_i, k_p_v, k_p_i = jax.random.split(key, 4)

    # ---------------- obs_type == 'vector' ----------------
    dim_obs, dims_hidden, dim_action = 8, (32, 32), 4
    batch = 2
    x_vec = jax.random.normal(k_in_v, (batch, dim_obs), jnp.float32)
    p_vec = init_qnetwork_vector(k_p_v, dim_obs, dims_hidden, dim_action)

    prep_vec = prepare_vector_params(p_vec)                       # f32 (exact semantics)
    fwd_vec = jax.jit(lambda x: qnetwork_vector_forward(x, prep_vec))
    q_vec = jax.block_until_ready(fwd_vec(x_vec))
    assert q_vec.shape == (batch, dim_action)
    ref_v = ref_vector_forward(x_vec, p_vec)
    assert jnp.allclose(q_vec, ref_v, atol=1e-4, rtol=1e-4)

    # Optional bf16 compute path for the vector MLP — loose check.
    prep_vec_bf = prepare_vector_params(p_vec, compute_dtype=jnp.bfloat16)
    q_vec_bf = jax.block_until_ready(qnetwork_vector_forward(x_vec, prep_vec_bf))
    assert jnp.allclose(q_vec_bf, ref_v, atol=5e-2, rtol=5e-2)

    # ---------------- obs_type == 'image' ----------------
    # 64x80 input -> conv8/4 -> 15x19 -> conv3/2 -> 7x9 -> conv2/1 -> 6x8 ;
    # 64*6*8 = 3072, matching nn.Linear(3072, 512).
    x_img = jax.random.normal(k_in_i, (batch, 3, 64, 80), jnp.float32)
    p_img = init_qnetwork_image(k_p_i, dim_action)

    # f32 path: validates structure (patch ordering, padding, fc1 permutation) tightly.
    prep_img_f32 = prepare_image_params(p_img, (64, 80), compute_dtype=jnp.float32)
    q_img_f32 = jax.block_until_ready(qnetwork_image_forward(x_img, prep_img_f32))
    ref_i = ref_image_forward(x_img, p_img)
    assert q_img_f32.shape == (batch, dim_action)
    assert jnp.allclose(q_img_f32, ref_i, atol=1e-3, rtol=1e-3)

    # bf16 path (default): halves weight-DMA / activation HBM bytes, f32 accumulation.
    prep_img = prepare_image_params(p_img, (64, 80))              # bf16 by default
    fwd_img = jax.jit(lambda x: qnetwork_image_forward(x, prep_img))
    q_img = jax.block_until_ready(fwd_img(x_img))
    assert q_img.shape == (batch, dim_action)
    assert jnp.allclose(q_img, ref_i, atol=1.5e-1, rtol=1e-1)

    print("KERNEL_OK")
</pallas_src>

<mosaic_0001>
module attributes {stable_mosaic.version = 11 : i64} {
  func.func @_fused_mlp_kernel(%arg0: i32, %arg1: memref<2x8xf32, #tpu.memory_space<vmem>>, %arg2: memref<8x128xf32, #tpu.memory_space<vmem>>, %arg3: memref<1x128xf32, #tpu.memory_space<vmem>>, %arg4: memref<128x128xf32, #tpu.memory_space<vmem>>, %arg5: memref<1x128xf32, #tpu.memory_space<vmem>>, %arg6: memref<128x128xf32, #tpu.memory_space<vmem>>, %arg7: memref<1x128xf32, #tpu.memory_space<vmem>>, %arg8: memref<2x128xf32, #tpu.memory_space<vmem>>) attributes {dimension_semantics = [#tpu.dimension_semantics<parallel>], iteration_bounds = array<i64: 1>, scalar_prefetch = 0 : i64, scratch_operands = 0 : i64, tpu.core_type = #tpu.core_type<tc>, window_params = [{transform_indices = @transform_0, window_bounds = array<i64: 2, 8>}, {pipeline_mode = #tpu.pipeline_mode<synchronous>, transform_indices = @transform_1, window_bounds = array<i64: 8, 128>}, {pipeline_mode = #tpu.pipeline_mode<synchronous>, transform_indices = @transform_2, window_bounds = array<i64: 1, 128>}, {pipeline_mode = #tpu.pipeline_mode<synchronous>, transform_indices = @transform_3, window_bounds = array<i64: 128, 128>}, {pipeline_mode = #tpu.pipeline_mode<synchronous>, transform_indices = @transform_4, window_bounds = array<i64: 1, 128>}, {pipeline_mode = #tpu.pipeline_mode<synchronous>, transform_indices = @transform_5, window_bounds = array<i64: 128, 128>}, {pipeline_mode = #tpu.pipeline_mode<synchronous>, transform_indices = @transform_6, window_bounds = array<i64: 1, 128>}, {transform_indices = @transform_7, window_bounds = array<i64: 2, 128>}]} {
    %c0 = arith.constant 0 : index
    %c0_0 = arith.constant 0 : index
    %0 = vector.load %arg1[%c0, %c0_0] : memref<2x8xf32, #tpu.memory_space<vmem>>, vector<2x8xf32>
    %c0_1 = arith.constant 0 : index
    %c0_2 = arith.constant 0 : index
    %1 = vector.load %arg2[%c0_1, %c0_2] : memref<8x128xf32, #tpu.memory_space<vmem>>, vector<8x128xf32>
    %c0_3 = arith.constant 0 : index
    %c0_4 = arith.constant 0 : index
    %2 = vector.load %arg3[%c0_3, %c0_4] : memref<1x128xf32, #tpu.memory_space<vmem>>, vector<1x128xf32>
    %cst = arith.constant dense<0.000000e+00> : vector<2x128xf32>
    %3 = tpu.matmul %0, %1, %cst {dimension_numbers = #tpu.dot_dimension_numbers<[1], [0], [0], [1], [0, 0, 1, 1], [], []>} : vector<2x8xf32>, vector<8x128xf32>, vector<2x128xf32> -> vector<2x128xf32>
    %4 = vector.broadcast %2 : vector<1x128xf32> to vector<2x128xf32>
    %5 = arith.addf %3, %4 : vector<2x128xf32>
    %cst_5 = arith.constant 0.000000e+00 : f32
    %6 = vector.broadcast %cst_5 : f32 to vector<2x128xf32>
    %7 = arith.maximumf %5, %6 : vector<2x128xf32>
    %c0_6 = arith.constant 0 : index
    %c0_7 = arith.constant 0 : index
    %8 = vector.load %arg4[%c0_6, %c0_7] : memref<128x128xf32, #tpu.memory_space<vmem>>, vector<128x128xf32>
    %c0_8 = arith.constant 0 : index
    %c0_9 = arith.constant 0 : index
    %9 = vector.load %arg5[%c0_8, %c0_9] : memref<1x128xf32, #tpu.memory_space<vmem>>, vector<1x128xf32>
    %cst_10 = arith.constant dense<0.000000e+00> : vector<2x128xf32>
    %10 = tpu.matmul %7, %8, %cst_10 {dimension_numbers = #tpu.dot_dimension_numbers<[1], [0], [0], [1], [0, 0, 1, 1], [], []>} : vector<2x128xf32>, vector<128x128xf32>, vector<2x128xf32> -> vector<2x128xf32>
    %11 = vector.broadcast %9 : vector<1x128xf32> to vector<2x128xf32>
    %12 = arith.addf %10, %11 : vector<2x128xf32>
    %cst_11 = arith.constant 0.000000e+00 : f32
    %13 = vector.broadcast %cst_11 : f32 to vector<2x128xf32>
    %14 = arith.maximumf %12, %13 : vector<2x128xf32>
    %c0_12 = arith.constant 0 : index
    %c0_13 = arith.constant 0 : index
    %15 = vector.load %arg6[%c0_12, %c0_13] : memref<128x128xf32, #tpu.memory_space<vmem>>, vector<128x128xf32>
    %c0_14 = arith.constant 0 : index
    %c0_15 = arith.constant 0 : index
    %16 = vector.load %arg7[%c0_14, %c0_15] : memref<1x128xf32, #tpu.memory_space<vmem>>, vector<1x128xf32>
    %cst_16 = arith.constant dense<0.000000e+00> : vector<2x128xf32>
    %17 = tpu.matmul %14, %15, %cst_16 {dimension_numbers = #tpu.dot_dimension_numbers<[1], [0], [0], [1], [0, 0, 1, 1], [], []>} : vector<2x128xf32>, vector<128x128xf32>, vector<2x128xf32> -> vector<2x128xf32>
    %18 = vector.broadcast %16 : vector<1x128xf32> to vector<2x128xf32>
    %19 = arith.addf %17, %18 : vector<2x128xf32>
    %c0_17 = arith.constant 0 : index
    %c0_18 = arith.constant 0 : index
    %20 = vector.load %arg8[%c0_17, %c0_18] : memref<2x128xf32, #tpu.memory_space<vmem>>, vector<2x128xf32>
    tpu.vector_store %arg8[%c0_17, %c0_18], %19 {strides = array<i32>} : memref<2x128xf32, #tpu.memory_space<vmem>>, vector<2x128xf32>,
    return
  }
  func.func @transform_0(%arg0: i32) -> (i32, i32) {
    %c0_i32 = arith.constant 0 : i32
    %c0_i32_0 = arith.constant 0 : i32
    return %arg0, %c0_i32 : i32, i32
  }
  func.func @transform_1(%arg0: i32) -> (i32, i32) {
    %c0_i32 = arith.constant 0 : i32
    %c0_i32_0 = arith.constant 0 : i32
    %c0_i32_1 = arith.constant 0 : i32
    return %c0_i32, %c0_i32_0 : i32, i32
  }
  func.func @transform_2(%arg0: i32) -> (i32, i32) {
    %c0_i32 = arith.constant 0 : i32
    %c0_i32_0 = arith.constant 0 : i32
    %c0_i32_1 = arith.constant 0 : i32
    return %c0_i32, %c0_i32_0 : i32, i32
  }
  func.func @transform_3(%arg0: i32) -> (i32, i32) {
    %c0_i32 = arith.constant 0 : i32
    %c0_i32_0 = arith.constant 0 : i32
    %c0_i32_1 = arith.constant 0 : i32
    return %c0_i32, %c0_i32_0 : i32, i32
  }
  func.func @transform_4(%arg0: i32) -> (i32, i32) {
    %c0_i32 = arith.constant 0 : i32
    %c0_i32_0 = arith.constant 0 : i32
    %c0_i32_1 = arith.constant 0 : i32
    return %c0_i32, %c0_i32_0 : i32, i32
  }
  func.func @transform_5(%arg0: i32) -> (i32, i32) {
    %c0_i32 = arith.constant 0 : i32
    %c0_i32_0 = arith.constant 0 : i32
    %c0_i32_1 = arith.constant 0 : i32
    return %c0_i32, %c0_i32_0 : i32, i32
  }
  func.func @transform_6(%arg0: i32) -> (i32, i32) {
    %c0_i32 = arith.constant 0 : i32
    %c0_i32_0 = arith.constant 0 : i32
    %c0_i32_1 = arith.constant 0 : i32
    return %c0_i32, %c0_i32_0 : i32, i32
  }
  func.func @transform_7(%arg0: i32) -> (i32, i32) {
    %c0_i32 = arith.constant 0 : i32
    %c0_i32_0 = arith.constant 0 : i32
    return %arg0, %c0_i32 : i32, i32
  }
}

</mosaic_0001>

<llo_original>
// kernel: _lambda_.1
$region0: #{_lambda_.1}
  #allocation0 [shape = 'u32[]', space=smem, size = 0x4, offset = 0x4, fixed_abs, tag = 'smem constant byte address 0x4 - core index']
  #allocation1 [shape = 'u32[72,128]{1,0:T(1,128)}', space=vmem, size = 0x9000, scoped, tag = 'internal scratch']
  %s0 = inlined_call_operand.hbm [shape: f32[2,8], index: 0, kind: input, shape index: {}]
  %s1 = inlined_call_operand.hbm [shape: f32[8,128], index: 1, kind: input, shape index: {}]
  %s2 = inlined_call_operand.hbm [shape: f32[1,128], index: 2, kind: input, shape index: {}]
  %s3 = inlined_call_operand.hbm [shape: f32[128,128], index: 3, kind: input, shape index: {}]
  %s4 = inlined_call_operand.vmem [shape: f32[1,128], index: 4, kind: input, shape index: {}]
  %s5 = inlined_call_operand.hbm [shape: f32[128,128], index: 5, kind: input, shape index: {}]
  %s6 = inlined_call_operand.vmem [shape: f32[1,128], index: 6, kind: input, shape index: {}]
  %s7 = inlined_call_operand.hbm [shape: f32[2,128], index: 7, kind: output, shape index: {}]
  %s8 = sld [smem:[#allocation0]]
  $region58: #{_lambda_.1} parent=0
    _
  %s10 = ssub.s32 1, %s8
  %s11 = scalar_select 0, %s10, %s8
  $region1: #{_lambda_.1} parent=0
    #allocation2 [shape = 'u8[1024]{0}', space=vmem, size = 0x400, scoped, tag = 'input window, operand 0, single buffered']
    #allocation3 [shape = 's32[1]{0}', space=sflag, size = 0x4, scoped, tag = 'scoped memory for _lambda_.1']
    #allocation4 [shape = 's32[1]{0}', space=sflag, size = 0x4, scoped, tag = 'scoped memory for _lambda_.1']
    #allocation5 [shape = 'u8[4096]{0}', space=vmem, size = 0x1000, scoped, tag = 'input window, operand 1, single buffered']
    #allocation6 [shape = 's32[1]{0}', space=sflag, size = 0x4, scoped, tag = 'scoped memory for _lambda_.1']
    #allocation7 [shape = 'u8[512]{0}', space=vmem, size = 0x400, scoped, tag = 'input window, operand 2, single buffered']
    #allocation8 [shape = 'u8[65536]{0}', space=vmem, size = 0x10000, scoped, tag = 'input window, operand 3, single buffered']
    #allocation9 [shape = 's32[1]{0}', space=sflag, size = 0x4, scoped, tag = 'scoped memory for _lambda_.1']
    #allocation10 [shape = 'u8[65536]{0}', space=vmem, size = 0x10000, scoped, tag = 'input window, operand 5, single buffered']
    #allocation11 [shape = 'u8[1024]{0}', space=vmem, size = 0x400, scoped, tag = 'output window, operand 0, single buffered']
    %12 = vsyncpa [#allocation3], 0
    %13 = vsyncpa [#allocation6], 0
    %14 = vsyncpa [#allocation9], 0
    %15 = vsyncpa [#allocation4], 0
    // Predicated region
    $region2: #{_lambda_.1} parent=1 // pred_check
      _
    $region3: #{_lambda_.1} parent=1 // pred_check_branch
      %17 = sbr.rel (0) target = $region5
    $region4: #{_lambda_.1} parent=1 // pred_region
      %19 = vsyncadd [#allocation3], 0
      %s21 = sshll.u32 %s0, 4
      %s22 = int_to_ptr.hbm [resolvable:$true] %s21
      %s23 = sshll.u32 [#allocation2], 4
      %s24 = int_to_ptr.vmem [resolvable:$true] %s23
      %26 = dma.hbm_to_vmem [thread:$0]  %s22, 32, %s24, [#allocation3]
    $region5: #{_lambda_.1} parent=1 // pred_fallthru
      _
    // Predicated region
    $region6: #{_lambda_.1} parent=1 // pred_check
      _
    $region7: #{_lambda_.1} parent=1 // pred_check_branch
      %28 = sbr.rel (0) target = $region9
    $region8: #{_lambda_.1} parent=1 // pred_region
      %30 = vsyncadd [#allocation6], 0
      %s32 = sshll.u32 %s1, 4
      %s33 = int_to_ptr.hbm [resolvable:$true] %s32
      %s34 = sshll.u32 [#allocation5], 4
      %s35 = int_to_ptr.vmem [resolvable:$true] %s34
      %37 = dma.hbm_to_vmem [thread:$0]  %s33, 128, %s35, [#allocation6]
    $region9: #{_lambda_.1} parent=1 // pred_fallthru
      _
    // Predicated region
    $region10: #{_lambda_.1} parent=1 // pred_check
      _
    $region11: #{_lambda_.1} parent=1 // pred_check_branch
      %39 = sbr.rel (0) target = $region13
    $region12: #{_lambda_.1} parent=1 // pred_region
      %41 = vsyncadd [#allocation6], 0
      %s43 = sshll.u32 %s2, 4
      %s44 = int_to_ptr.hbm [resolvable:$true] %s43
      %s45 = sshll.u32 [#allocation7], 4
      %s46 = int_to_ptr.vmem [resolvable:$true] %s45
      %48 = dma.hbm_to_vmem [thread:$0]  %s44, 16, %s46, [#allocation6]
    $region13: #{_lambda_.1} parent=1 // pred_fallthru
      _
    // Predicated region
    $region14: #{_lambda_.1} parent=1 // pred_check
      _
    $region15: #{_lambda_.1} parent=1 // pred_check_branch
      %50 = sbr.rel (0) target = $region17
    $region16: #{_lambda_.1} parent=1 // pred_region
      %52 = vsyncadd [#allocation9], 0
      %s53 = sshll.u32 %s3, 4
      %s54 = int_to_ptr.hbm [resolvable:$true] %s53
      %s55 = sshll.u32 [#allocation8], 4
      %s56 = int_to_ptr.vmem [resolvable:$true] %s55
      %61 = dma.hbm_to_vmem [thread:$0]  %s54, 2048, %s56, [#allocation9], 128, 128, 8
    $region17: #{_lambda_.1} parent=1 // pred_fallthru
      _
    // Predicated region
    $region18: #{_lambda_.1} parent=1 // pred_check
      _
    $region19: #{_lambda_.1} parent=1 // pred_check_branch
      %63 = sbr.rel (0) target = $region21
    $region20: #{_lambda_.1} parent=1 // pred_region
      _
    $region21: #{_lambda_.1} parent=1 // pred_fallthru
      _
    // Predicated region
    $region22: #{_lambda_.1} parent=1 // pred_check
      _
    $region23: #{_lambda_.1} parent=1 // pred_check_branch
      %65 = sbr.rel (0) target = $region25
    $region24: #{_lambda_.1} parent=1 // pred_region
      %67 = vsyncadd [#allocation9], 0
      %s68 = sshll.u32 %s5, 4
      %s69 = int_to_ptr.hbm [resolvable:$true] %s68
      %s70 = sshll.u32 [#allocation10], 4
      %s71 = int_to_ptr.vmem [resolvable:$true] %s70
      %76 = dma.hbm_to_vmem [thread:$0]  %s69, 2048, %s71, [#allocation9], 128, 128, 8
    $region25: #{_lambda_.1} parent=1 // pred_fallthru
      _
    // Predicated region
    $region26: #{_lambda_.1} parent=1 // pred_check
      _
    $region27: #{_lambda_.1} parent=1 // pred_check_branch
      %78 = sbr.rel (0) target = $region29
    $region28: #{_lambda_.1} parent=1 // pred_region
      _
    $region29: #{_lambda_.1} parent=1 // pred_fallthru
      _
    // Predicated region
    $region30: #{_lambda_.1} parent=1 // pred_check
      _
    $region31: #{_lambda_.1} parent=1 // pred_check_branch
      %80 = sbr.rel (0) target = $region33
    $region32: #{_lambda_.1} parent=1 // pred_region
      %82 = dma.done [#allocation3], 32
    $region33: #{_lambda_.1} parent=1 // pred_fallthru
      _
    // Predicated region
    $region34: #{_lambda_.1} parent=1 // pred_check
      _
    $region35: #{_lambda_.1} parent=1 // pred_check_branch
      %84 = sbr.rel (0) target = $region37
    $region36: #{_lambda_.1} parent=1 // pred_region
      %86 = dma.done [#allocation6], 128
    $region37: #{_lambda_.1} parent=1 // pred_fallthru
      _
    // Predicated region
    $region38: #{_lambda_.1} parent=1 // pred_check
      _
    $region39: #{_lambda_.1} parent=1 // pred_check_branch
      %88 = sbr.rel (0) target = $region41
    $region40: #{_lambda_.1} parent=1 // pred_region
      %90 = dma.done [#allocation6], 16
    $region41: #{_lambda_.1} parent=1 // pred_fallthru
      _
    // Predicated region
    $region42: #{_lambda_.1} parent=1 // pred_check
      _
    $region43: #{_lambda_.1} parent=1 // pred_check_branch
      %92 = sbr.rel (0) target = $region45
    $region44: #{_lambda_.1} parent=1 // pred_region
      %94 = dma.done [#allocation9], 2048
    $region45: #{_lambda_.1} parent=1 // pred_fallthru
      _
    // Predicated region
    $region46: #{_lambda_.1} parent=1 // pred_check
      _
    $region47: #{_lambda_.1} parent=1 // pred_check_branch
      %96 = sbr.rel (0) target = $region49
    $region48: #{_lambda_.1} parent=1 // pred_region
      %98 = dma.done [#allocation9], 2048
    $region49: #{_lambda_.1} parent=1 // pred_fallthru
      _
    %v99 = vld [vmem:[#allocation2] sm:$0x3]
    %v100 = vld [vmem:[#allocation5] sm:$0xff]
    %v101 = vld [vmem:[#allocation7] sm:$0x1]
    %v103 = vperm.slane %v101, 0
    %vm105 = vcmask 64512
    %v107 = vsel %vm105, %v99, 0
    %109 = vmatpush.msra.mxu0 0.0
    %110 = vmatpush.msra.mxu0 0.0
    %111 = vmatpush.msra.mxu0 0.0
    %112 = vmatpush.msra.mxu0 0.0
    %113 = vmatpush.msra.mxu0 0.0
    %114 = vmatpush.msra.mxu0 0.0
    %115 = vmatpush.msra.mxu0 0.0
    %116 = vmatpush.msra.mxu0 0.0
    %117 = vmatpush.msra.mxu0 0.0
    %118 = vmatpush.msra.mxu0 0.0
    %119 = vmatpush.msra.mxu0 0.0
    %120 = vmatpush.msra.mxu0 0.0
    %121 = vmatpush.msra.mxu0 0.0
    %122 = vmatpush.msra.mxu0 0.0
    %123 = vmatpush.msra.mxu0 0.0
    %124 = vmatpush.msra.mxu0 %v100
    %125 = vmatmul.f32.gmra.mxu0 %v107
    %v126 = vpop.f32.mrf.mxu0
    %v127 = vadd.f32 %v103, %v126
    %128 = vdwg.mxu0
    %v129 = vmax.f32 %v127, 0.0
    %v130 = vld [vmem:[#allocation8] sm:$0xff]
    %v131 = vld [vmem:[#allocation8 + $0x8] sm:$0xff]
    %v132 = vld [vmem:[#allocation8 + $0x10] sm:$0xff]
    %v133 = vld [vmem:[#allocation8 + $0x18] sm:$0xff]
    %v134 = vld [vmem:[#allocation8 + $0x20] sm:$0xff]
    %v135 = vld [vmem:[#allocation8 + $0x28] sm:$0xff]
    %v136 = vld [vmem:[#allocation8 + $0x30] sm:$0xff]
    %v137 = vld [vmem:[#allocation8 + $0x38] sm:$0xff]
    %v138 = vld [vmem:[#allocation8 + $0x40] sm:$0xff]
    %v139 = vld [vmem:[#allocation8 + $0x48] sm:$0xff]
    %v140 = vld [vmem:[#allocation8 + $0x50] sm:$0xff]
    %v141 = vld [vmem:[#allocation8 + $0x58] sm:$0xff]
    %v142 = vld [vmem:[#allocation8 + $0x60] sm:$0xff]
    %v143 = vld [vmem:[#allocation8 + $0x68] sm:$0xff]
    %v144 = vld [vmem:[#allocation8 + $0x70] sm:$0xff]
    %v145 = vld [vmem:[#allocation8 + $0x78] sm:$0xff]
    %v146 = vld [vmem:[%s4] sm:$0x1]
    %v148 = vperm.slane %v146, 0
    %150 = vmatpush.msra.mxu0 %v145
    %151 = vmatpush.msra.mxu0 %v144
    %152 = vmatpush.msra.mxu0 %v143
    %153 = vmatpush.msra.mxu0 %v142
    %154 = vmatpush.msra.mxu0 %v141
    %155 = vmatpush.msra.mxu0 %v140
    %156 = vmatpush.msra.mxu0 %v139
    %157 = vmatpush.msra.mxu0 %v138
    %158 = vmatpush.msra.mxu0 %v137
    %159 = vmatpush.msra.mxu0 %v136
    %160 = vmatpush.msra.mxu0 %v135
    %161 = vmatpush.msra.mxu0 %v134
    %162 = vmatpush.msra.mxu0 %v133
    %163 = vmatpush.msra.mxu0 %v132
    %164 = vmatpush.msra.mxu0 %v131
    %165 = vmatpush.msra.mxu0 %v130
    %166 = vmatmul.f32.gmra.mxu0 %v129
    %v167 = vpop.f32.mrf.mxu0
    %v168 = vadd.f32 %v148, %v167
    %169 = vdwg.mxu0
    %v170 = vmax.f32 %v168, 0.0
    %v171 = vld [vmem:[#allocation10] sm:$0xff]
    %v172 = vld [vmem:[#allocation10 + $0x8] sm:$0xff]
    %v173 = vld [vmem:[#allocation10 + $0x10] sm:$0xff]
    %v174 = vld [vmem:[#allocation10 + $0x18] sm:$0xff]
    %v175 = vld [vmem:[#allocation10 + $0x20] sm:$0xff]
    %v176 = vld [vmem:[#allocation10 + $0x28] sm:$0xff]
    %v177 = vld [vmem:[#allocation10 + $0x30] sm:$0xff]
    %v178 = vld [vmem:[#allocation10 + $0x38] sm:$0xff]
    %v179 = vld [vmem:[#allocation10 + $0x40] sm:$0xff]
    %v180 = vld [vmem:[#allocation10 + $0x48] sm:$0xff]
    %v181 = vld [vmem:[#allocation10 + $0x50] sm:$0xff]
    %v182 = vld [vmem:[#allocation10 + $0x58] sm:$0xff]
    %v183 = vld [vmem:[#allocation10 + $0x60] sm:$0xff]
    %v184 = vld [vmem:[#allocation10 + $0x68] sm:$0xff]
    %v185 = vld [vmem:[#allocation10 + $0x70] sm:$0xff]
    %v186 = vld [vmem:[#allocation10 + $0x78] sm:$0xff]
    %v187 = vld [vmem:[%s6] sm:$0x1]
    %v189 = vperm.slane %v187, 0
    %191 = vmatpush.msra.mxu0 %v186
    %192 = vmatpush.msra.mxu0 %v185
    %193 = vmatpush.msra.mxu0 %v184
    %194 = vmatpush.msra.mxu0 %v183
    %195 = vmatpush.msra.mxu0 %v182
    %196 = vmatpush.msra.mxu0 %v181
    %197 = vmatpush.msra.mxu0 %v180
    %198 = vmatpush.msra.mxu0 %v179
    %199 = vmatpush.msra.mxu0 %v178
    %200 = vmatpush.msra.mxu0 %v177
    %201 = vmatpush.msra.mxu0 %v176
    %202 = vmatpush.msra.mxu0 %v175
    %203 = vmatpush.msra.mxu0 %v174
    %204 = vmatpush.msra.mxu0 %v173
    %205 = vmatpush.msra.mxu0 %v172
    %206 = vmatpush.msra.mxu0 %v171
    %207 = vmatmul.f32.gmra.mxu0 %v170
    %v208 = vpop.f32.mrf.mxu0
    %v209 = vadd.f32 %v189, %v208
    %210 = vdwg.mxu0
    %211 = vst [vmem:[#allocation11] sm:$0x3] %v209
    // Predicated region
    $region50: #{_lambda_.1} parent=1 // pred_check
      _
    $region51: #{_lambda_.1} parent=1 // pred_check_branch
      %213 = sbr.rel (0) target = $region53
    $region52: #{_lambda_.1} parent=1 // pred_region
      %215 = vsyncadd [#allocation4], 0
      %s217 = sshll.u32 [#allocation11], 4
      %s218 = int_to_ptr.vmem [resolvable:$true] %s217
      %s219 = sshll.u32 %s7, 4
      %s220 = int_to_ptr.hbm [resolvable:$true] %s219
      %222 = dma.vmem_to_hbm [thread:$0]  %s218, 32, %s220, [#allocation4]
    $region53: #{_lambda_.1} parent=1 // pred_fallthru
      _
    // Predicated region
    $region54: #{_lambda_.1} parent=1 // pred_check
      _
    $region55: #{_lambda_.1} parent=1 // pred_check_branch
      %224 = sbr.rel (0) target = $region57
    $region56: #{_lambda_.1} parent=1 // pred_region
      %226 = dma.done [#allocation4], 32
    $region57: #{_lambda_.1} parent=1 // pred_fallthru
      _
    %227 = vsyncpa [#allocation3], 1
    %228 = vsyncpa [#allocation6], 1
    %229 = vsyncpa [#allocation9], 1
    %230 = vsyncpa [#allocation4], 1

</llo_original>
